<compile_context>
chip_gen: v7x
topology: tpu7x:2x2x1
jax: 0.10.0
libtpu: 0.0.40
codegen_flags: <defaults>
</compile_context>

<pallas_src>
import math

import jax
import jax.numpy as jnp
from jax.experimental import pallas as pl
from jax.experimental.pallas import tpu as pltpu


def _cdiv(a, b):
    return -(-a // b)


def _round_up(v, m):
    return _cdiv(v, m) * m


def _padded_block_bytes(shape, dtype):
    """(8,128)-tile-padded VMEM footprint of one buffer (dtype sublane packing)."""
    it = jnp.dtype(dtype).itemsize
    packing = max(1, 4 // it)
    shape = tuple(int(d) for d in shape)
    if len(shape) < 2:
        shape = (1,) * (2 - len(shape)) + shape
    lead = 1
    for d in shape[:-2]:
        lead *= d
    rows = _round_up(shape[-2], 8 * packing)
    cols = _round_up(shape[-1], 128)
    return lead * rows * cols * it


def _vmem_limit_bytes(est):
    """Generation-aware VMEM request: <= ~85% of physical VMEM (v7x = 64 MiB/TC)."""
    try:
        info = pltpu.get_tpu_info()
        cap = int(getattr(info, "vmem_capacity_bytes", 128 * 1024 * 1024))
    except Exception:
        cap = 64 * 1024 * 1024          # conservative fallback (v7x per-TensorCore)
    hi = int(cap * 0.85)
    lo = min(32 * 1024 * 1024, hi)
    return int(min(max(est, lo), hi))


def _choose_tile_n(n_rows, tile_n_max, row_align):
    """Large aligned N tile (per-step overhead dominates for tiny F/GO); prefer an
    even tile count so the 'parallel' axis splits evenly across v7x's 2 cores."""
    tile_n_max = max(tile_n_max, row_align)
    tn = min(_round_up(tile_n_max, row_align), _round_up(n_rows, row_align))
    n_tiles = _cdiv(n_rows, tn)
    if n_tiles > 1 and n_tiles % 2:
        tn_even = _round_up(_cdiv(n_rows, n_tiles + 1), row_align)
        if tn_even > 0 and _cdiv(n_rows, tn_even) % 2 == 0:
            tn = tn_even
    return tn


def _make_kernel(layer_groups, layer_douts, fold_k):
    """layer_groups: per layer, list of (d_in, d_out) for each packed weight ref."""
    n_layers = len(layer_groups)
    n_w = sum(len(g) for g in layer_groups)

    def kernel(*refs):
        x_ref = refs[0]
        w_refs = refs[1:1 + n_w]
        b_ref = refs[1 + n_w]              # (L, max_do) f32, row i = layer i bias
        o_ref = refs[2 + n_w]

        bias = b_ref[...]
        h = x_ref[...]                     # (TN, F)
        wi = 0
        for li, groups in enumerate(layer_groups):
            parts = []
            col = 0
            for din, dout in groups:
                w = w_refs[wi][...]
                wi += 1
                whole = (len(groups) == 1 and col == 0 and din == h.shape[-1])
                hin = h if whole else h[:, col:col + din]
                parts.append(jnp.dot(hin.astype(w.dtype), w,
                                     preferred_element_type=jnp.float32))
                col += din
            acc = parts[0] if len(parts) == 1 else jnp.concatenate(parts, axis=-1)
            do_total = layer_douts[li]
            acc = acc + bias[li:li + 1, 0:do_total]          # broadcast bias row
            if li < n_layers - 1:
                acc = jnp.maximum(acc, 0.0)                   # ReLU (dropout = id)
            h = acc

        if fold_k > 1:                      # lane-dense store: fold rows into lanes
            tn, go = h.shape
            h = h.reshape(tn // fold_k, fold_k * go)
        o_ref[...] = h.astype(o_ref.dtype)

    return kernel


def pack_branched_params(weights, biases, param_dtype=jnp.float32, group_lanes=256):
    """Pack per-branch params into lane-dense fused matrices (done once, offline).

    weights[i]: (G, d_in_i, d_out_i), biases[i]: (G, 1, d_out_i).
    Returns (packed_w, b_all):
      packed_w[0]   = [ (F, G*H) ]                branch-concatenated layer-1 weight
      packed_w[i>0] = [ per-group block-diagonal (k*d_in, k*d_out) matrices ],
                      groups of ~group_lanes output lanes (256 for v6e/v7x MXU,
                      use 128 on v5e) so VMEM / FLOPs scale with G*group, not G^2.
      b_all         = (L, max(G*d_out_i)) f32, row i = layer i bias, zero padded.
    Column index everywhere is g*d_out + j (torch GroupedLinear ordering).
    """
    G = weights[0].shape[0]
    packed_w = []

    w1 = weights[0]                                        # (G, F, H)
    F = w1.shape[1]
    packed_w.append([jnp.transpose(w1, (1, 0, 2))
                     .reshape(F, G * w1.shape[2]).astype(param_dtype)])

    for w in weights[1:]:                                  # (G, d_in, d_out)
        _, di, do = w.shape
        gs = max(1, min(G, group_lanes // max(do, 1)))     # branches per group
        groups = []
        for s in range(0, G, gs):
            e = min(s + gs, G)
            k = e - s
            eye = jnp.eye(k, dtype=w.dtype)
            bd = jnp.einsum("gh,gij->gihj", eye, w[s:e]).reshape(k * di, k * do)
            groups.append(bd.astype(param_dtype))
        packed_w.append(groups)

    douts = [G * w.shape[2] for w in weights]
    max_do = max(douts)
    rows = []
    for b, do in zip(biases, douts):
        row = b.reshape(do)                                # column g*d_out + j
        rows.append(jnp.pad(row, (0, max_do - do)))
    b_all = jnp.stack(rows, axis=0).astype(jnp.float32)    # (L, max_do)
    return packed_w, b_all


def branched_linear_forward(x, packed_w, b_all, *, tile_n=512):
    """x: (N, in_features). packed_w / b_all from pack_branched_params.
    Output dtype follows x (pass bf16 x only if upstream already produces bf16)."""
    N, F = x.shape
    layer_groups = [[(int(w.shape[0]), int(w.shape[1])) for w in groups]
                    for groups in packed_w]
    layer_douts = [sum(d for _, d in g) for g in layer_groups]
    GO = layer_douts[-1]                                   # G * out_group_size
    L, max_do = b_all.shape
    flat_w = [w for groups in packed_w for w in groups]

    # Lane-dense output store: fold k row-blocks per stored row when GO < 128.
    fold_k = 1
    if GO < 128:
        k = _cdiv(128, GO)
        if N % k == 0:            # valid region must end on a folded-row boundary
            fold_k = k

    def run(single_buffer, fold):
        row_align = 8 * fold if fold > 1 else 8
        TN = _choose_tile_n(N, tile_n, row_align)
        grid = (_cdiv(N, TN),)    # ragged tail: Pallas masks the partial block

        param_mode = {}
        if single_buffer:
            # Grid-invariant weights/bias: one resident copy, no double buffer.
            param_mode = dict(pipeline_mode=pl.Buffered(1))

        in_specs = [pl.BlockSpec((TN, F), lambda n: (n, 0))]       # streamed x tiles
        for w in flat_w:
            in_specs.append(pl.BlockSpec(w.shape, lambda n: (0, 0), **param_mode))
        in_specs.append(pl.BlockSpec((L, max_do), lambda n: (0, 0), **param_mode))

        if fold > 1:
            out_arr_shape = (N // fold, fold * GO)
            out_block = (TN // fold, fold * GO)
        else:
            out_arr_shape = (N, GO)
            out_block = (TN, GO)
        out_specs = pl.BlockSpec(out_block, lambda n: (n, 0))
        out_shape = jax.ShapeDtypeStruct(out_arr_shape, x.dtype)

        # Padding-aware VMEM budget: double-buffered x/out tiles, single- (or
        # double-) buffered resident params, plus f32 intermediate headroom.
        param_bufs = 1 if single_buffer else 2
        est = 2 * _padded_block_bytes((TN, F), x.dtype)
        est += 2 * _padded_block_bytes(out_block, x.dtype)
        for w in flat_w:
            est += param_bufs * _padded_block_bytes(w.shape, w.dtype)
        est += param_bufs * _padded_block_bytes((L, max_do), b_all.dtype)
        est += 4 * _padded_block_bytes((TN, max(layer_douts)), jnp.float32)

        out = pl.pallas_call(
            _make_kernel(layer_groups, layer_douts, fold),
            grid=grid,
            in_specs=in_specs,
            out_specs=out_specs,
            out_shape=out_shape,
            compiler_params=pltpu.CompilerParams(
                dimension_semantics=("parallel",),
                vmem_limit_bytes=_vmem_limit_bytes(est)),
        )(x, *flat_w, b_all)
        out = jax.block_until_ready(out)
        if fold > 1:
            out = out.reshape(N, GO)       # free row-major view back to (N, GO)
        return out

    # Most aggressive config first; fall back if this JAX/Mosaic build rejects
    # single-buffering or the folded-store relayout.
    attempts = [(True, fold_k)]
    if fold_k > 1:
        attempts.append((True, 1))
    attempts.append((False, 1))
    last_err = None
    for sb, fk in attempts:
        try:
            return run(sb, fk)
        except Exception as e:             # retry with a safer configuration
            last_err = e
    raise last_err


def init_branched_linear_params(key, in_features, hidden_group_size,
                                out_group_size, n_branches, n_layers):
    """Mirror GroupedLinear.reset_parameters (kaiming_uniform_ a=sqrt(3),
    uniform bias bound 1/sqrt(fan_in))."""
    weights, biases = [], []
    cur = in_features
    for i in range(n_layers):
        d_out = out_group_size if (i + 1 == n_layers) else hidden_group_size
        key, kw, kb = jax.random.split(key, 3)
        fan_in = cur * d_out                       # torch fan_in for (G, d_in, d_out)
        gain = math.sqrt(2.0 / (1.0 + 3.0))        # a = sqrt(3)
        w_bound = gain * math.sqrt(3.0 / fan_in)
        b_bound = 1.0 / math.sqrt(fan_in)
        w = jax.random.uniform(kw, (n_branches, cur, d_out),
                               minval=-w_bound, maxval=w_bound, dtype=jnp.float32)
        b = jax.random.uniform(kb, (n_branches, 1, d_out),
                               minval=-b_bound, maxval=b_bound, dtype=jnp.float32)
        weights.append(w)
        biases.append(b)
        cur = hidden_group_size
    return weights, biases


def reference_forward(x, weights, biases):
    """Plain-JAX reference mirroring the torch graph (dropout = identity)."""
    n_layers = len(weights)
    G = weights[0].shape[0]
    h = jnp.broadcast_to(x[None], (G,) + x.shape)
    for i in range(n_layers):
        h = jnp.einsum("gnd,gde->gne", h, weights[i]) + biases[i]
        if i < n_layers - 1:
            h = jnp.maximum(h, 0.0)
    N = x.shape[0]
    out = weights[-1].shape[-1]
    return jnp.transpose(h, (1, 0, 2)).reshape(N, G * out)


if __name__ == "__main__":
    in_features = 16
    hidden_group_size = 32
    out_group_size = 8
    n_branches = 3
    n_layers = 3

    key = jax.random.PRNGKey(0)
    key, kx = jax.random.split(key)
    x = jax.random.normal(kx, (8, in_features), dtype=jnp.float32)

    weights, biases = init_branched_linear_params(
        key, in_features, hidden_group_size, out_group_size, n_branches, n_layers)
    y_ref = reference_forward(x, weights, biases)

    # 1) f32 path (tight tolerance).
    pw, pb = pack_branched_params(weights, biases, param_dtype=jnp.float32)
    y = jax.block_until_ready(branched_linear_forward(x, pw, pb))
    assert y.shape == (8, n_branches * out_group_size), y.shape
    assert jnp.allclose(y, y_ref, atol=1e-5, rtol=1e-5), "f32 mismatch vs reference"

    # 2) bf16 streaming path (bf16 x/weights/out, f32 MXU accumulation).
    pw16, pb16 = pack_branched_params(weights, biases, param_dtype=jnp.bfloat16)
    y16 = jax.block_until_ready(branched_linear_forward(x.astype(jnp.bfloat16), pw16, pb16))
    assert y16.dtype == jnp.bfloat16
    assert jnp.allclose(y16.astype(jnp.float32), y_ref, atol=5e-2, rtol=5e-2), "bf16 mismatch"

    # 3) ragged-N tiled path (no wrapper pad; partial final block masked on writeback).
    key, kx2 = jax.random.split(key)
    x2 = jax.random.normal(kx2, (40, in_features), dtype=jnp.float32)
    y2_ref = reference_forward(x2, weights, biases)
    y2 = jax.block_until_ready(branched_linear_forward(x2, pw, pb, tile_n=16))
    assert jnp.allclose(y2, y2_ref, atol=1e-5, rtol=1e-5), "tiled mismatch vs reference"

    # 4) grouped block-diagonal packing (multiple MXU-width groups per layer).
    pwg, pbg = pack_branched_params(weights, biases, param_dtype=jnp.float32, group_lanes=64)
    yg = jax.block_until_ready(branched_linear_forward(x2, pwg, pbg, tile_n=16))
    assert jnp.allclose(yg, y2_ref, atol=1e-5, rtol=1e-5), "grouped mismatch vs reference"

    # 5) lane-dense folded output store (GO=24 < 128 -> fold 6 rows per stored row).
    key, kx3 = jax.random.split(key)
    x3 = jax.random.normal(kx3, (96, in_features), dtype=jnp.float32)
    y3 = jax.block_until_ready(branched_linear_forward(x3, pw, pb, tile_n=48))
    assert jnp.allclose(y3, reference_forward(x3, weights, biases), atol=1e-5, rtol=1e-5), \
        "folded-output mismatch vs reference"

    print("KERNEL_OK")
</pallas_src>

<mosaic_0001>
module attributes {stable_mosaic.version = 11 : i64} {
  func.func @kernel(%arg0: i32, %arg1: memref<8x16xf32, #tpu.memory_space<vmem>>, %arg2: memref<16x96xf32, #tpu.memory_space<vmem>>, %arg3: memref<96x96xf32, #tpu.memory_space<vmem>>, %arg4: memref<96x24xf32, #tpu.memory_space<vmem>>, %arg5: memref<3x96xf32, #tpu.memory_space<vmem>>, %arg6: memref<8x24xf32, #tpu.memory_space<vmem>>) attributes {dimension_semantics = [#tpu.dimension_semantics<parallel>], iteration_bounds = array<i64: 1>, scalar_prefetch = 0 : i64, scratch_operands = 0 : i64, tpu.core_type = #tpu.core_type<tc>, window_params = [{transform_indices = @transform_0, window_bounds = array<i64: 8, 16>}, {pipeline_mode = #tpu.pipeline_mode<synchronous>, transform_indices = @transform_1, window_bounds = array<i64: 16, 96>}, {pipeline_mode = #tpu.pipeline_mode<synchronous>, transform_indices = @transform_2, window_bounds = array<i64: 96, 96>}, {pipeline_mode = #tpu.pipeline_mode<synchronous>, transform_indices = @transform_3, window_bounds = array<i64: 96, 24>}, {pipeline_mode = #tpu.pipeline_mode<synchronous>, transform_indices = @transform_4, window_bounds = array<i64: 3, 96>}, {transform_indices = @transform_5, window_bounds = array<i64: 8, 24>}]} {
    %c0 = arith.constant 0 : index
    %c0_0 = arith.constant 0 : index
    %0 = vector.load %arg5[%c0, %c0_0] : memref<3x96xf32, #tpu.memory_space<vmem>>, vector<3x96xf32>
    %c0_1 = arith.constant 0 : index
    %c0_2 = arith.constant 0 : index
    %1 = vector.load %arg1[%c0_1, %c0_2] : memref<8x16xf32, #tpu.memory_space<vmem>>, vector<8x16xf32>
    %c0_3 = arith.constant 0 : index
    %c0_4 = arith.constant 0 : index
    %2 = vector.load %arg2[%c0_3, %c0_4] : memref<16x96xf32, #tpu.memory_space<vmem>>, vector<16x96xf32>
    %cst = arith.constant dense<0.000000e+00> : vector<8x96xf32>
    %3 = tpu.matmul %1, %2, %cst {dimension_numbers = #tpu.dot_dimension_numbers<[1], [0], [0], [1], [0, 0, 1, 1], [], []>} : vector<8x16xf32>, vector<16x96xf32>, vector<8x96xf32> -> vector<8x96xf32>
    %4 = vector.extract_strided_slice %0 {offsets = [0, 0], sizes = [1, 96], strides = [1, 1]} : vector<3x96xf32> to vector<1x96xf32>
    %5 = vector.broadcast %4 : vector<1x96xf32> to vector<8x96xf32>
    %6 = arith.addf %3, %5 : vector<8x96xf32>
    %cst_5 = arith.constant 0.000000e+00 : f32
    %7 = vector.broadcast %cst_5 : f32 to vector<8x96xf32>
    %8 = arith.maximumf %6, %7 : vector<8x96xf32>
    %c0_6 = arith.constant 0 : index
    %c0_7 = arith.constant 0 : index
    %9 = vector.load %arg3[%c0_6, %c0_7] : memref<96x96xf32, #tpu.memory_space<vmem>>, vector<96x96xf32>
    %cst_8 = arith.constant dense<0.000000e+00> : vector<8x96xf32>
    %10 = tpu.matmul %8, %9, %cst_8 {dimension_numbers = #tpu.dot_dimension_numbers<[1], [0], [0], [1], [0, 0, 1, 1], [], []>} : vector<8x96xf32>, vector<96x96xf32>, vector<8x96xf32> -> vector<8x96xf32>
    %11 = vector.extract_strided_slice %0 {offsets = [1, 0], sizes = [1, 96], strides = [1, 1]} : vector<3x96xf32> to vector<1x96xf32>
    %12 = vector.broadcast %11 : vector<1x96xf32> to vector<8x96xf32>
    %13 = arith.addf %10, %12 : vector<8x96xf32>
    %cst_9 = arith.constant 0.000000e+00 : f32
    %14 = vector.broadcast %cst_9 : f32 to vector<8x96xf32>
    %15 = arith.maximumf %13, %14 : vector<8x96xf32>
    %c0_10 = arith.constant 0 : index
    %c0_11 = arith.constant 0 : index
    %16 = vector.load %arg4[%c0_10, %c0_11] : memref<96x24xf32, #tpu.memory_space<vmem>>, vector<96x24xf32>
    %cst_12 = arith.constant dense<0.000000e+00> : vector<8x24xf32>
    %17 = tpu.matmul %15, %16, %cst_12 {dimension_numbers = #tpu.dot_dimension_numbers<[1], [0], [0], [1], [0, 0, 1, 1], [], []>} : vector<8x96xf32>, vector<96x24xf32>, vector<8x24xf32> -> vector<8x24xf32>
    %18 = vector.extract_strided_slice %0 {offsets = [2, 0], sizes = [1, 24], strides = [1, 1]} : vector<3x96xf32> to vector<1x24xf32>
    %19 = vector.broadcast %18 : vector<1x24xf32> to vector<8x24xf32>
    %20 = arith.addf %17, %19 : vector<8x24xf32>
    %c0_13 = arith.constant 0 : index
    %c0_14 = arith.constant 0 : index
    %21 = vector.load %arg6[%c0_13, %c0_14] : memref<8x24xf32, #tpu.memory_space<vmem>>, vector<8x24xf32>
    tpu.vector_store %arg6[%c0_13, %c0_14], %20 {strides = array<i32>} : memref<8x24xf32, #tpu.memory_space<vmem>>, vector<8x24xf32>,
    return
  }
  func.func @transform_0(%arg0: i32) -> (i32, i32) {
    %c0_i32 = arith.constant 0 : i32
    %c0_i32_0 = arith.constant 0 : i32
    return %arg0, %c0_i32 : i32, i32
  }
  func.func @transform_1(%arg0: i32) -> (i32, i32) {
    %c0_i32 = arith.constant 0 : i32
    %c0_i32_0 = arith.constant 0 : i32
    %c0_i32_1 = arith.constant 0 : i32
    return %c0_i32, %c0_i32_0 : i32, i32
  }
  func.func @transform_2(%arg0: i32) -> (i32, i32) {
    %c0_i32 = arith.constant 0 : i32
    %c0_i32_0 = arith.constant 0 : i32
    %c0_i32_1 = arith.constant 0 : i32
    return %c0_i32, %c0_i32_0 : i32, i32
  }
  func.func @transform_3(%arg0: i32) -> (i32, i32) {
    %c0_i32 = arith.constant 0 : i32
    %c0_i32_0 = arith.constant 0 : i32
    %c0_i32_1 = arith.constant 0 : i32
    return %c0_i32, %c0_i32_0 : i32, i32
  }
  func.func @transform_4(%arg0: i32) -> (i32, i32) {
    %c0_i32 = arith.constant 0 : i32
    %c0_i32_0 = arith.constant 0 : i32
    %c0_i32_1 = arith.constant 0 : i32
    return %c0_i32, %c0_i32_0 : i32, i32
  }
  func.func @transform_5(%arg0: i32) -> (i32, i32) {
    %c0_i32 = arith.constant 0 : i32
    %c0_i32_0 = arith.constant 0 : i32
    return %arg0, %c0_i32 : i32, i32
  }
}

module attributes {stable_mosaic.version = 11 : i64} {
  func.func @kernel(%arg0: i32, %arg1: memref<8x16xf32, #tpu.memory_space<vmem>>, %arg2: memref<16x96xf32, #tpu.memory_space<vmem>>, %arg3: memref<96x96xf32, #tpu.memory_space<vmem>>, %arg4: memref<96x24xf32, #tpu.memory_space<vmem>>, %arg5: memref<3x96xf32, #tpu.memory_space<vmem>>, %arg6: memref<8x24xf32, #tpu.memory_space<vmem>>) attributes {dimension_semantics = [#tpu.dimension_semantics<parallel>], iteration_bounds = array<i64: 1>, scalar_prefetch = 0 : i64, scratch_operands = 0 : i64, tpu.core_type = #tpu.core_type<tc>, window_params = [{transform_indices = @transform_0, window_bounds = array<i64: 8, 16>}, {pipeline_mode = #tpu.pipeline_mode<synchronous>, transform_indices = @transform_1, window_bounds = array<i64: 16, 96>}, {pipeline_mode = #tpu.pipeline_mode<synchronous>, transform_indices = @transform_2, window_bounds = array<i64: 96, 96>}, {pipeline_mode = #tpu.pipeline_mode<synchronous>, transform_indices = @transform_3, window_bounds = array<i64: 96, 24>}, {pipeline_mode = #tpu.pipeline_mode<synchronous>, transform_indices = @transform_4, window_bounds = array<i64: 3, 96>}, {transform_indices = @transform_5, window_bounds = array<i64: 8, 24>}]} {
    %c0 = arith.constant 0 : index
    %c0_0 = arith.constant 0 : index
    %0 = vector.load %arg5[%c0, %c0_0] : memref<3x96xf32, #tpu.memory_space<vmem>>, vector<3x96xf32>
    %c0_1 = arith.constant 0 : index
    %c0_2 = arith.constant 0 : index
    %1 = vector.load %arg1[%c0_1, %c0_2] : memref<8x16xf32, #tpu.memory_space<vmem>>, vector<8x16xf32>
    %c0_3 = arith.constant 0 : index
    %c0_4 = arith.constant 0 : index
    %2 = vector.load %arg2[%c0_3, %c0_4] : memref<16x96xf32, #tpu.memory_space<vmem>>, vector<16x96xf32>
    %cst = arith.constant dense<0.000000e+00> : vector<8x96xf32>
    %3 = tpu.matmul %1, %2, %cst {dimension_numbers = #tpu.dot_dimension_numbers<[1], [0], [0], [1], [0, 0, 1, 1], [], []>} : vector<8x16xf32>, vector<16x96xf32>, vector<8x96xf32> -> vector<8x96xf32>
    %4 = vector.extract_strided_slice %0 {offsets = [0, 0], sizes = [1, 96], strides = [1, 1]} : vector<3x96xf32> to vector<1x96xf32>
    %5 = vector.broadcast %4 : vector<1x96xf32> to vector<8x96xf32>
    %6 = arith.addf %3, %5 : vector<8x96xf32>
    %cst_5 = arith.constant 0.000000e+00 : f32
    %7 = vector.broadcast %cst_5 : f32 to vector<8x96xf32>
    %8 = arith.maximumf %6, %7 : vector<8x96xf32>
    %c0_6 = arith.constant 0 : index
    %c0_7 = arith.constant 0 : index
    %9 = vector.load %arg3[%c0_6, %c0_7] : memref<96x96xf32, #tpu.memory_space<vmem>>, vector<96x96xf32>
    %cst_8 = arith.constant dense<0.000000e+00> : vector<8x96xf32>
    %10 = tpu.matmul %8, %9, %cst_8 {dimension_numbers = #tpu.dot_dimension_numbers<[1], [0], [0], [1], [0, 0, 1, 1], [], []>} : vector<8x96xf32>, vector<96x96xf32>, vector<8x96xf32> -> vector<8x96xf32>
    %11 = vector.extract_strided_slice %0 {offsets = [1, 0], sizes = [1, 96], strides = [1, 1]} : vector<3x96xf32> to vector<1x96xf32>
    %12 = vector.broadcast %11 : vector<1x96xf32> to vector<8x96xf32>
    %13 = arith.addf %10, %12 : vector<8x96xf32>
    %cst_9 = arith.constant 0.000000e+00 : f32
    %14 = vector.broadcast %cst_9 : f32 to vector<8x96xf32>
    %15 = arith.maximumf %13, %14 : vector<8x96xf32>
    %c0_10 = arith.constant 0 : index
    %c0_11 = arith.constant 0 : index
    %16 = vector.load %arg4[%c0_10, %c0_11] : memref<96x24xf32, #tpu.memory_space<vmem>>, vector<96x24xf32>
    %cst_12 = arith.constant dense<0.000000e+00> : vector<8x24xf32>
    %17 = tpu.matmul %15, %16, %cst_12 {dimension_numbers = #tpu.dot_dimension_numbers<[1], [0], [0], [1], [0, 0, 1, 1], [], []>} : vector<8x96xf32>, vector<96x24xf32>, vector<8x24xf32> -> vector<8x24xf32>
    %18 = vector.extract_strided_slice %0 {offsets = [2, 0], sizes = [1, 24], strides = [1, 1]} : vector<3x96xf32> to vector<1x24xf32>
    %19 = vector.broadcast %18 : vector<1x24xf32> to vector<8x24xf32>
    %20 = arith.addf %17, %19 : vector<8x24xf32>
    %c0_13 = arith.constant 0 : index
    %c0_14 = arith.constant 0 : index
    %21 = vector.load %arg6[%c0_13, %c0_14] : memref<8x24xf32, #tpu.memory_space<vmem>>, vector<8x24xf32>
    tpu.vector_store %arg6[%c0_13, %c0_14], %20 {strides = array<i32>} : memref<8x24xf32, #tpu.memory_space<vmem>>, vector<8x24xf32>,
    return
  }
  func.func @transform_0(%arg0: i32) -> (i32, i32) {
    %c0_i32 = arith.constant 0 : i32
    %c0_i32_0 = arith.constant 0 : i32
    return %arg0, %c0_i32 : i32, i32
  }
  func.func @transform_1(%arg0: i32) -> (i32, i32) {
    %c0_i32 = arith.constant 0 : i32
    %c0_i32_0 = arith.constant 0 : i32
    %c0_i32_1 = arith.constant 0 : i32
    return %c0_i32, %c0_i32_0 : i32, i32
  }
  func.func @transform_2(%arg0: i32) -> (i32, i32) {
    %c0_i32 = arith.constant 0 : i32
    %c0_i32_0 = arith.constant 0 : i32
    %c0_i32_1 = arith.constant 0 : i32
    return %c0_i32, %c0_i32_0 : i32, i32
  }
  func.func @transform_3(%arg0: i32) -> (i32, i32) {
    %c0_i32 = arith.constant 0 : i32
    %c0_i32_0 = arith.constant 0 : i32
    %c0_i32_1 = arith.constant 0 : i32
    return %c0_i32, %c0_i32_0 : i32, i32
  }
  func.func @transform_4(%arg0: i32) -> (i32, i32) {
    %c0_i32 = arith.constant 0 : i32
    %c0_i32_0 = arith.constant 0 : i32
    %c0_i32_1 = arith.constant 0 : i32
    return %c0_i32, %c0_i32_0 : i32, i32
  }
  func.func @transform_5(%arg0: i32) -> (i32, i32) {
    %c0_i32 = arith.constant 0 : i32
    %c0_i32_0 = arith.constant 0 : i32
    return %arg0, %c0_i32 : i32, i32
  }
}

</mosaic_0001>

<llo_original>
// kernel: tpu_custom_call.1
$region0: #{tpu_custom_call.1}
  #allocation0 [shape = 'u32[]', space=smem, size = 0x4, offset = 0x4, fixed_abs, tag = 'smem constant byte address 0x4 - core index']
  #allocation1 [shape = 'u32[144,128]{1,0:T(1,128)}', space=vmem, size = 0x12000, scoped, tag = 'internal scratch']
  %s0 = inlined_call_operand.vmem [shape: f32[8,16], index: 0, kind: input, shape index: {}]
  %s1 = inlined_call_operand.vmem [shape: f32[16,96], index: 1, kind: input, shape index: {}]
  %s2 = inlined_call_operand.vmem [shape: f32[96,96], index: 2, kind: input, shape index: {}]
  %s3 = inlined_call_operand.vmem [shape: f32[96,24], index: 3, kind: input, shape index: {}]
  %s4 = inlined_call_operand.vmem [shape: f32[3,96], index: 4, kind: input, shape index: {}]
  %s5 = inlined_call_operand.hbm [shape: f32[8,24], index: 5, kind: output, shape index: {}]
  %s6 = sld [smem:[#allocation0]]
  $region30: #{tpu_custom_call.1} parent=0
    _
  %s8 = ssub.s32 1, %s6
  %s9 = scalar_select 0, %s8, %s6
  $region1: #{tpu_custom_call.1} parent=0
    #allocation2 [shape = 'u8[4096]{0}', space=vmem, size = 0x1000, scoped, tag = 'output window, operand 0, single buffered']
    #allocation3 [shape = 's32[1]{0}', space=sflag, size = 0x4, scoped, tag = 'scoped memory for tpu_custom_call.1']
    %10 = vsyncpa [#allocation3], 0
    // Predicated region
    $region2: #{tpu_custom_call.1} parent=1 // pred_check
      _
    $region3: #{tpu_custom_call.1} parent=1 // pred_check_branch
      %12 = sbr.rel (0) target = $region5
    $region4: #{tpu_custom_call.1} parent=1 // pred_region
      _
    $region5: #{tpu_custom_call.1} parent=1 // pred_fallthru
      _
    // Predicated region
    $region6: #{tpu_custom_call.1} parent=1 // pred_check
      _
    $region7: #{tpu_custom_call.1} parent=1 // pred_check_branch
      %14 = sbr.rel (0) target = $region9
    $region8: #{tpu_custom_call.1} parent=1 // pred_region
      _
    $region9: #{tpu_custom_call.1} parent=1 // pred_fallthru
      _
    // Predicated region
    $region10: #{tpu_custom_call.1} parent=1 // pred_check
      _
    $region11: #{tpu_custom_call.1} parent=1 // pred_check_branch
      %16 = sbr.rel (0) target = $region13
    $region12: #{tpu_custom_call.1} parent=1 // pred_region
      _
    $region13: #{tpu_custom_call.1} parent=1 // pred_fallthru
      _
    // Predicated region
    $region14: #{tpu_custom_call.1} parent=1 // pred_check
      _
    $region15: #{tpu_custom_call.1} parent=1 // pred_check_branch
      %18 = sbr.rel (0) target = $region17
    $region16: #{tpu_custom_call.1} parent=1 // pred_region
      _
    $region17: #{tpu_custom_call.1} parent=1 // pred_fallthru
      _
    // Predicated region
    $region18: #{tpu_custom_call.1} parent=1 // pred_check
      _
    $region19: #{tpu_custom_call.1} parent=1 // pred_check_branch
      %20 = sbr.rel (0) target = $region21
    $region20: #{tpu_custom_call.1} parent=1 // pred_region
      _
    $region21: #{tpu_custom_call.1} parent=1 // pred_fallthru
      _
    %v21 = vld [vmem:[%s4] sm:$0x7]
    %v22 = vld [vmem:[%s0] sm:$0xff]
    %v23 = vld [vmem:[%s1] sm:$0xff]
    %v24 = vld [vmem:[%s1 + $0x8] sm:$0xff]
    %v25 = vlaneseq
    %v26 = vshrl.u32 %v25, 7
    %v27 = vsub.s32 0, %v26
    %v28 = vrot.slane %v21, %v27
    %vm29 = vcmask 130048
    %v31 = vsel %vm29, %v22, 0
    %33 = vmatprep.subr.mxu0 0.0
    %34 = vmatpush1.msra.mxu0 %v23
    %35 = vmatprep.subr.mxu0 0.0
    %36 = vmatpush1.msra.mxu0 %v24
    %37 = vmatprep.subr.mxu0 0.0
    %38 = vmatpush1.msra.mxu0 0.0
    %39 = vmatprep.subr.mxu0 0.0
    %40 = vmatpush1.msra.mxu0 0.0
    %41 = vmatprep.subr.mxu0 0.0
    %42 = vmatpush1.msra.mxu0 0.0
    %43 = vmatprep.subr.mxu0 0.0
    %44 = vmatpush1.msra.mxu0 0.0
    %45 = vmatprep.subr.mxu0 0.0
    %46 = vmatpush1.msra.mxu0 0.0
    %47 = vmatprep.subr.mxu0 0.0
    %48 = vmatpush1.msra.mxu0 0.0
    %49 = vmatprep.subr.mxu0 0.0
    %50 = vmatpush1.msra.mxu0 0.0
    %51 = vmatprep.subr.mxu0 0.0
    %52 = vmatpush1.msra.mxu0 0.0
    %53 = vmatprep.subr.mxu0 0.0
    %54 = vmatpush1.msra.mxu0 0.0
    %55 = vmatprep.subr.mxu0 0.0
    %56 = vmatpush1.msra.mxu0 0.0
    %57 = vmatprep.subr.mxu0 0.0
    %58 = vmatpush1.msra.mxu0 0.0
    %59 = vmatprep.subr.mxu0 0.0
    %60 = vmatpush1.msra.mxu0 0.0
    %61 = vmatprep.subr.mxu0 0.0
    %62 = vmatpush1.msra.mxu0 0.0
    %63 = vmatprep.subr.mxu0 0.0
    %64 = vmatpush1.msra.mxu0 0.0
    %65 = vmatprep.subr.mxu0 0.0
    %66 = vmatpush1.msra.mxu0 0.0
    %67 = vmatprep.subr.mxu0 0.0
    %68 = vmatpush1.msra.mxu0 0.0
    %69 = vmatprep.subr.mxu0 0.0
    %70 = vmatpush1.msra.mxu0 0.0
    %71 = vmatprep.subr.mxu0 0.0
    %72 = vmatpush1.msra.mxu0 0.0
    %73 = vmatprep.subr.mxu0 0.0
    %74 = vmatpush1.msra.mxu0 0.0
    %75 = vmatprep.subr.mxu0 0.0
    %76 = vmatpush1.msra.mxu0 0.0
    %77 = vmatprep.subr.mxu0 0.0
    %78 = vmatpush1.msra.mxu0 0.0
    %79 = vmatprep.subr.mxu0 0.0
    %80 = vmatpush1.msra.mxu0 0.0
    %81 = vmatprep.subr.mxu0 0.0
    %82 = vmatpush1.msra.mxu0 0.0
    %83 = vmatprep.subr.mxu0 0.0
    %84 = vmatpush1.msra.mxu0 0.0
    %85 = vmatprep.subr.mxu0 0.0
    %86 = vmatpush1.msra.mxu0 0.0
    %87 = vmatprep.subr.mxu0 0.0
    %88 = vmatpush1.msra.mxu0 0.0
    %89 = vmatprep.subr.mxu0 0.0
    %90 = vmatpush1.msra.mxu0 0.0
    %91 = vmatprep.subr.mxu0 0.0
    %92 = vmatpush1.msra.mxu0 0.0
    %93 = vmatprep.subr.mxu0 0.0
    %94 = vmatpush1.msra.mxu0 0.0
    %95 = vmatprep.subr.mxu0 0.0
    %96 = vmatpush1.msra.mxu0 0.0
    %97 = vmatprep.mubr.f32.mxu0 0.0
    %98 = vmatmul.mubr.f32.gmra.mrb[0].mxu0 %v31
    %v99 = vpop.f32.mrb[0].mxu0
    %v100 = vadd.f32 %v28, %v99
    %v101 = vpop.f32.mrb[0].mxu0
    %102 = vdwg.mxu0
    %v103 = vmax.f32 %v100, 0.0
    %v104 = vld [vmem:[%s2] sm:$0xff]
    %v105 = vld [vmem:[%s2 + $0x8] sm:$0xff]
    %v106 = vld [vmem:[%s2 + $0x10] sm:$0xff]
    %v107 = vld [vmem:[%s2 + $0x18] sm:$0xff]
    %v108 = vld [vmem:[%s2 + $0x20] sm:$0xff]
    %v109 = vld [vmem:[%s2 + $0x28] sm:$0xff]
    %v110 = vld [vmem:[%s2 + $0x30] sm:$0xff]
    %v111 = vld [vmem:[%s2 + $0x38] sm:$0xff]
    %v112 = vld [vmem:[%s2 + $0x40] sm:$0xff]
    %v113 = vld [vmem:[%s2 + $0x48] sm:$0xff]
    %v114 = vld [vmem:[%s2 + $0x50] sm:$0xff]
    %v115 = vld [vmem:[%s2 + $0x58] sm:$0xff]
    %v116 = vlaneseq
    %v117 = vshrl.u32 %v116, 7
    %v118 = vsub.s32 1, %v117
    %v119 = vrot.slane %v21, %v118
    %vm120 = vcmask 785408
    %v122 = vsel %vm120, %v103, 0
    %124 = vmatprep.subr.mxu0 0.0
    %125 = vmatpush1.msra.mxu0 %v104
    %126 = vmatprep.subr.mxu0 0.0
    %127 = vmatpush1.msra.mxu0 %v105
    %128 = vmatprep.subr.mxu0 0.0
    %129 = vmatpush1.msra.mxu0 %v106
    %130 = vmatprep.subr.mxu0 0.0
    %131 = vmatpush1.msra.mxu0 %v107
    %132 = vmatprep.subr.mxu0 0.0
    %133 = vmatpush1.msra.mxu0 %v108
    %134 = vmatprep.subr.mxu0 0.0
    %135 = vmatpush1.msra.mxu0 %v109
    %136 = vmatprep.subr.mxu0 0.0
    %137 = vmatpush1.msra.mxu0 %v110
    %138 = vmatprep.subr.mxu0 0.0
    %139 = vmatpush1.msra.mxu0 %v111
    %140 = vmatprep.subr.mxu0 0.0
    %141 = vmatpush1.msra.mxu0 %v112
    %142 = vmatprep.subr.mxu0 0.0
    %143 = vmatpush1.msra.mxu0 %v113
    %144 = vmatprep.subr.mxu0 0.0
    %145 = vmatpush1.msra.mxu0 %v114
    %146 = vmatprep.subr.mxu0 0.0
    %147 = vmatpush1.msra.mxu0 %v115
    %148 = vmatprep.subr.mxu0 0.0
    %149 = vmatpush1.msra.mxu0 0.0
    %150 = vmatprep.subr.mxu0 0.0
    %151 = vmatpush1.msra.mxu0 0.0
    %152 = vmatprep.subr.mxu0 0.0
    %153 = vmatpush1.msra.mxu0 0.0
    %154 = vmatprep.subr.mxu0 0.0
    %155 = vmatpush1.msra.mxu0 0.0
    %156 = vmatprep.subr.mxu0 0.0
    %157 = vmatpush1.msra.mxu0 0.0
    %158 = vmatprep.subr.mxu0 0.0
    %159 = vmatpush1.msra.mxu0 0.0
    %160 = vmatprep.subr.mxu0 0.0
    %161 = vmatpush1.msra.mxu0 0.0
    %162 = vmatprep.subr.mxu0 0.0
    %163 = vmatpush1.msra.mxu0 0.0
    %164 = vmatprep.subr.mxu0 0.0
    %165 = vmatpush1.msra.mxu0 0.0
    %166 = vmatprep.subr.mxu0 0.0
    %167 = vmatpush1.msra.mxu0 0.0
    %168 = vmatprep.subr.mxu0 0.0
    %169 = vmatpush1.msra.mxu0 0.0
    %170 = vmatprep.subr.mxu0 0.0
    %171 = vmatpush1.msra.mxu0 0.0
    %172 = vmatprep.subr.mxu0 0.0
    %173 = vmatpush1.msra.mxu0 0.0
    %174 = vmatprep.subr.mxu0 0.0
    %175 = vmatpush1.msra.mxu0 0.0
    %176 = vmatprep.subr.mxu0 0.0
    %177 = vmatpush1.msra.mxu0 0.0
    %178 = vmatprep.subr.mxu0 0.0
    %179 = vmatpush1.msra.mxu0 0.0
    %180 = vmatprep.subr.mxu0 0.0
    %181 = vmatpush1.msra.mxu0 0.0
    %182 = vmatprep.subr.mxu0 0.0
    %183 = vmatpush1.msra.mxu0 0.0
    %184 = vmatprep.subr.mxu0 0.0
    %185 = vmatpush1.msra.mxu0 0.0
    %186 = vmatprep.subr.mxu0 0.0
    %187 = vmatpush1.msra.mxu0 0.0
    %188 = vmatprep.mubr.f32.mxu0 0.0
    %189 = vmatmul.mubr.f32.gmra.mrb[0].mxu0 %v122
    %v190 = vpop.f32.mrb[0].mxu0
    %v191 = vadd.f32 %v119, %v190
    %v192 = vpop.f32.mrb[0].mxu0
    %193 = vdwg.mxu0
    %v194 = vmax.f32 %v191, 0.0
    %v195 = vld [vmem:[%s3] sm:$0xff]
    %v196 = vld [vmem:[%s3 + $0x8] sm:$0xff]
    %v197 = vld [vmem:[%s3 + $0x10] sm:$0xff]
    %v198 = vld [vmem:[%s3 + $0x18] sm:$0xff]
    %v199 = vld [vmem:[%s3 + $0x20] sm:$0xff]
    %v200 = vld [vmem:[%s3 + $0x28] sm:$0xff]
    %v201 = vld [vmem:[%s3 + $0x30] sm:$0xff]
    %v202 = vld [vmem:[%s3 + $0x38] sm:$0xff]
    %v203 = vld [vmem:[%s3 + $0x40] sm:$0xff]
    %v204 = vld [vmem:[%s3 + $0x48] sm:$0xff]
    %v205 = vld [vmem:[%s3 + $0x50] sm:$0xff]
    %v206 = vld [vmem:[%s3 + $0x58] sm:$0xff]
    %v207 = vlaneseq
    %v208 = vshrl.u32 %v207, 7
    %v209 = vsub.s32 2, %v208
    %v210 = vrot.slane %v21, %v209
    %v212 = vsel %vm120, %v194, 0
    %214 = vmatprep.subr.mxu0 0.0
    %215 = vmatpush1.msra.mxu0 %v195
    %216 = vmatprep.subr.mxu0 0.0
    %217 = vmatpush1.msra.mxu0 %v196
    %218 = vmatprep.subr.mxu0 0.0
    %219 = vmatpush1.msra.mxu0 %v197
    %220 = vmatprep.subr.mxu0 0.0
    %221 = vmatpush1.msra.mxu0 %v198
    %222 = vmatprep.subr.mxu0 0.0
    %223 = vmatpush1.msra.mxu0 %v199
    %224 = vmatprep.subr.mxu0 0.0
    %225 = vmatpush1.msra.mxu0 %v200
    %226 = vmatprep.subr.mxu0 0.0
    %227 = vmatpush1.msra.mxu0 %v201
    %228 = vmatprep.subr.mxu0 0.0
    %229 = vmatpush1.msra.mxu0 %v202
    %230 = vmatprep.subr.mxu0 0.0
    %231 = vmatpush1.msra.mxu0 %v203
    %232 = vmatprep.subr.mxu0 0.0
    %233 = vmatpush1.msra.mxu0 %v204
    %234 = vmatprep.subr.mxu0 0.0
    %235 = vmatpush1.msra.mxu0 %v205
    %236 = vmatprep.subr.mxu0 0.0
    %237 = vmatpush1.msra.mxu0 %v206
    %238 = vmatprep.subr.mxu0 0.0
    %239 = vmatpush1.msra.mxu0 0.0
    %240 = vmatprep.subr.mxu0 0.0
    %241 = vmatpush1.msra.mxu0 0.0
    %242 = vmatprep.subr.mxu0 0.0
    %243 = vmatpush1.msra.mxu0 0.0
    %244 = vmatprep.subr.mxu0 0.0
    %245 = vmatpush1.msra.mxu0 0.0
    %246 = vmatprep.subr.mxu0 0.0
    %247 = vmatpush1.msra.mxu0 0.0
    %248 = vmatprep.subr.mxu0 0.0
    %249 = vmatpush1.msra.mxu0 0.0
    %250 = vmatprep.subr.mxu0 0.0
    %251 = vmatpush1.msra.mxu0 0.0
    %252 = vmatprep.subr.mxu0 0.0
    %253 = vmatpush1.msra.mxu0 0.0
    %254 = vmatprep.subr.mxu0 0.0
    %255 = vmatpush1.msra.mxu0 0.0
    %256 = vmatprep.subr.mxu0 0.0
    %257 = vmatpush1.msra.mxu0 0.0
    %258 = vmatprep.subr.mxu0 0.0
    %259 = vmatpush1.msra.mxu0 0.0
    %260 = vmatprep.subr.mxu0 0.0
    %261 = vmatpush1.msra.mxu0 0.0
    %262 = vmatprep.subr.mxu0 0.0
    %263 = vmatpush1.msra.mxu0 0.0
    %264 = vmatprep.subr.mxu0 0.0
    %265 = vmatpush1.msra.mxu0 0.0
    %266 = vmatprep.subr.mxu0 0.0
    %267 = vmatpush1.msra.mxu0 0.0
    %268 = vmatprep.subr.mxu0 0.0
    %269 = vmatpush1.msra.mxu0 0.0
    %270 = vmatprep.subr.mxu0 0.0
    %271 = vmatpush1.msra.mxu0 0.0
    %272 = vmatprep.subr.mxu0 0.0
    %273 = vmatpush1.msra.mxu0 0.0
    %274 = vmatprep.subr.mxu0 0.0
    %275 = vmatpush1.msra.mxu0 0.0
    %276 = vmatprep.subr.mxu0 0.0
    %277 = vmatpush1.msra.mxu0 0.0
    %278 = vmatprep.mubr.f32.mxu0 0.0
    %279 = vmatmul.mubr.f32.gmra.mrb[0].mxu0 %v212
    %v280 = vpop.f32.mrb[0].mxu0
    %v281 = vadd.f32 %v210, %v280
    %v282 = vpop.f32.mrb[0].mxu0
    %283 = vdwg.mxu0
    %vm284 = vcmask 195584
    %285 = vst.msk [vmem:[#allocation2] sm:$0xff] %vm284, %v281
    // Predicated region
    $region22: #{tpu_custom_call.1} parent=1 // pred_check
      _
    $region23: #{tpu_custom_call.1} parent=1 // pred_check_branch
      %287 = sbr.rel (0) target = $region25
    $region24: #{tpu_custom_call.1} parent=1 // pred_region
      %s289 = ssub.s32 128, 128
      %290 = vsyncadd [#allocation3], %s289
      %s292 = sshll.u32 [#allocation2], 4
      %s293 = int_to_ptr.vmem [resolvable:$true] %s292
      %295 = dma.vmem_to_hbm [thread:$0]  %s293, 128, %s5, [#allocation3]
    $region25: #{tpu_custom_call.1} parent=1 // pred_fallthru
      _
    // Predicated region
    $region26: #{tpu_custom_call.1} parent=1 // pred_check
      _
    $region27: #{tpu_custom_call.1} parent=1 // pred_check_branch
      %297 = sbr.rel (0) target = $region29
    $region28: #{tpu_custom_call.1} parent=1 // pred_region
      %298 = dma.done [#allocation3], 128
    $region29: #{tpu_custom_call.1} parent=1 // pred_fallthru
      _
    %299 = vsyncpa [#allocation3], 1

// kernel: tpu_custom_call.1
$region0: #{tpu_custom_call.1}
  #allocation0 [shape = 'u32[]', space=smem, size = 0x4, offset = 0x4, fixed_abs, tag = 'smem constant byte address 0x4 - core index']
  #allocation1 [shape = 'u32[144,128]{1,0:T(1,128)}', space=vmem, size = 0x12000, scoped, tag = 'internal scratch']
  %s0 = inlined_call_operand.vmem [shape: f32[8,16], index: 0, kind: input, shape index: {}]
  %s1 = inlined_call_operand.vmem [shape: f32[16,96], index: 1, kind: input, shape index: {}]
  %s2 = inlined_call_operand.vmem [shape: f32[96,96], index: 2, kind: input, shape index: {}]
  %s3 = inlined_call_operand.vmem [shape: f32[96,24], index: 3, kind: input, shape index: {}]
  %s4 = inlined_call_operand.vmem [shape: f32[3,96], index: 4, kind: input, shape index: {}]
  %s5 = inlined_call_operand.hbm [shape: f32[8,24], index: 5, kind: output, shape index: {}]
  %s6 = sld [smem:[#allocation0]]
  $region30: #{tpu_custom_call.1} parent=0
    _
  %s8 = ssub.s32 1, %s6
  %s9 = scalar_select 0, %s8, %s6
  $region1: #{tpu_custom_call.1} parent=0
    #allocation2 [shape = 'u8[4096]{0}', space=vmem, size = 0x1000, scoped, tag = 'output window, operand 0, single buffered']
    #allocation3 [shape = 's32[1]{0}', space=sflag, size = 0x4, scoped, tag = 'scoped memory for tpu_custom_call.1']
    %10 = vsyncpa [#allocation3], 0
    // Predicated region
    $region2: #{tpu_custom_call.1} parent=1 // pred_check
      _
    $region3: #{tpu_custom_call.1} parent=1 // pred_check_branch
      %12 = sbr.rel (0) target = $region5
    $region4: #{tpu_custom_call.1} parent=1 // pred_region
      _
    $region5: #{tpu_custom_call.1} parent=1 // pred_fallthru
      _
    // Predicated region
    $region6: #{tpu_custom_call.1} parent=1 // pred_check
      _
    $region7: #{tpu_custom_call.1} parent=1 // pred_check_branch
      %14 = sbr.rel (0) target = $region9
    $region8: #{tpu_custom_call.1} parent=1 // pred_region
      _
    $region9: #{tpu_custom_call.1} parent=1 // pred_fallthru
      _
    // Predicated region
    $region10: #{tpu_custom_call.1} parent=1 // pred_check
      _
    $region11: #{tpu_custom_call.1} parent=1 // pred_check_branch
      %16 = sbr.rel (0) target = $region13
    $region12: #{tpu_custom_call.1} parent=1 // pred_region
      _
    $region13: #{tpu_custom_call.1} parent=1 // pred_fallthru
      _
    // Predicated region
    $region14: #{tpu_custom_call.1} parent=1 // pred_check
      _
    $region15: #{tpu_custom_call.1} parent=1 // pred_check_branch
      %18 = sbr.rel (0) target = $region17
    $region16: #{tpu_custom_call.1} parent=1 // pred_region
      _
    $region17: #{tpu_custom_call.1} parent=1 // pred_fallthru
      _
    // Predicated region
    $region18: #{tpu_custom_call.1} parent=1 // pred_check
      _
    $region19: #{tpu_custom_call.1} parent=1 // pred_check_branch
      %20 = sbr.rel (0) target = $region21
    $region20: #{tpu_custom_call.1} parent=1 // pred_region
      _
    $region21: #{tpu_custom_call.1} parent=1 // pred_fallthru
      _
    %v21 = vld [vmem:[%s4] sm:$0x7]
    %v22 = vld [vmem:[%s0] sm:$0xff]
    %v23 = vld [vmem:[%s1] sm:$0xff]
    %v24 = vld [vmem:[%s1 + $0x8] sm:$0xff]
    %v25 = vlaneseq
    %v26 = vshrl.u32 %v25, 7
    %v27 = vsub.s32 0, %v26
    %v28 = vrot.slane %v21, %v27
    %vm29 = vcmask 130048
    %v31 = vsel %vm29, %v22, 0
    %33 = vmatprep.subr.mxu0 0.0
    %34 = vmatpush1.msra.mxu0 %v23
    %35 = vmatprep.subr.mxu0 0.0
    %36 = vmatpush1.msra.mxu0 %v24
    %37 = vmatprep.subr.mxu0 0.0
    %38 = vmatpush1.msra.mxu0 0.0
    %39 = vmatprep.subr.mxu0 0.0
    %40 = vmatpush1.msra.mxu0 0.0
    %41 = vmatprep.subr.mxu0 0.0
    %42 = vmatpush1.msra.mxu0 0.0
    %43 = vmatprep.subr.mxu0 0.0
    %44 = vmatpush1.msra.mxu0 0.0
    %45 = vmatprep.subr.mxu0 0.0
    %46 = vmatpush1.msra.mxu0 0.0
    %47 = vmatprep.subr.mxu0 0.0
    %48 = vmatpush1.msra.mxu0 0.0
    %49 = vmatprep.subr.mxu0 0.0
    %50 = vmatpush1.msra.mxu0 0.0
    %51 = vmatprep.subr.mxu0 0.0
    %52 = vmatpush1.msra.mxu0 0.0
    %53 = vmatprep.subr.mxu0 0.0
    %54 = vmatpush1.msra.mxu0 0.0
    %55 = vmatprep.subr.mxu0 0.0
    %56 = vmatpush1.msra.mxu0 0.0
    %57 = vmatprep.subr.mxu0 0.0
    %58 = vmatpush1.msra.mxu0 0.0
    %59 = vmatprep.subr.mxu0 0.0
    %60 = vmatpush1.msra.mxu0 0.0
    %61 = vmatprep.subr.mxu0 0.0
    %62 = vmatpush1.msra.mxu0 0.0
    %63 = vmatprep.subr.mxu0 0.0
    %64 = vmatpush1.msra.mxu0 0.0
    %65 = vmatprep.subr.mxu0 0.0
    %66 = vmatpush1.msra.mxu0 0.0
    %67 = vmatprep.subr.mxu0 0.0
    %68 = vmatpush1.msra.mxu0 0.0
    %69 = vmatprep.subr.mxu0 0.0
    %70 = vmatpush1.msra.mxu0 0.0
    %71 = vmatprep.subr.mxu0 0.0
    %72 = vmatpush1.msra.mxu0 0.0
    %73 = vmatprep.subr.mxu0 0.0
    %74 = vmatpush1.msra.mxu0 0.0
    %75 = vmatprep.subr.mxu0 0.0
    %76 = vmatpush1.msra.mxu0 0.0
    %77 = vmatprep.subr.mxu0 0.0
    %78 = vmatpush1.msra.mxu0 0.0
    %79 = vmatprep.subr.mxu0 0.0
    %80 = vmatpush1.msra.mxu0 0.0
    %81 = vmatprep.subr.mxu0 0.0
    %82 = vmatpush1.msra.mxu0 0.0
    %83 = vmatprep.subr.mxu0 0.0
    %84 = vmatpush1.msra.mxu0 0.0
    %85 = vmatprep.subr.mxu0 0.0
    %86 = vmatpush1.msra.mxu0 0.0
    %87 = vmatprep.subr.mxu0 0.0
    %88 = vmatpush1.msra.mxu0 0.0
    %89 = vmatprep.subr.mxu0 0.0
    %90 = vmatpush1.msra.mxu0 0.0
    %91 = vmatprep.subr.mxu0 0.0
    %92 = vmatpush1.msra.mxu0 0.0
    %93 = vmatprep.subr.mxu0 0.0
    %94 = vmatpush1.msra.mxu0 0.0
    %95 = vmatprep.subr.mxu0 0.0
    %96 = vmatpush1.msra.mxu0 0.0
    %97 = vmatprep.mubr.f32.mxu0 0.0
    %98 = vmatmul.mubr.f32.gmra.mrb[0].mxu0 %v31
    %v99 = vpop.f32.mrb[0].mxu0
    %v100 = vadd.f32 %v28, %v99
    %v101 = vpop.f32.mrb[0].mxu0
    %102 = vdwg.mxu0
    %v103 = vmax.f32 %v100, 0.0
    %v104 = vld [vmem:[%s2] sm:$0xff]
    %v105 = vld [vmem:[%s2 + $0x8] sm:$0xff]
    %v106 = vld [vmem:[%s2 + $0x10] sm:$0xff]
    %v107 = vld [vmem:[%s2 + $0x18] sm:$0xff]
    %v108 = vld [vmem:[%s2 + $0x20] sm:$0xff]
    %v109 = vld [vmem:[%s2 + $0x28] sm:$0xff]
    %v110 = vld [vmem:[%s2 + $0x30] sm:$0xff]
    %v111 = vld [vmem:[%s2 + $0x38] sm:$0xff]
    %v112 = vld [vmem:[%s2 + $0x40] sm:$0xff]
    %v113 = vld [vmem:[%s2 + $0x48] sm:$0xff]
    %v114 = vld [vmem:[%s2 + $0x50] sm:$0xff]
    %v115 = vld [vmem:[%s2 + $0x58] sm:$0xff]
    %v116 = vlaneseq
    %v117 = vshrl.u32 %v116, 7
    %v118 = vsub.s32 1, %v117
    %v119 = vrot.slane %v21, %v118
    %vm120 = vcmask 785408
    %v122 = vsel %vm120, %v103, 0
    %124 = vmatprep.subr.mxu0 0.0
    %125 = vmatpush1.msra.mxu0 %v104
    %126 = vmatprep.subr.mxu0 0.0
    %127 = vmatpush1.msra.mxu0 %v105
    %128 = vmatprep.subr.mxu0 0.0
    %129 = vmatpush1.msra.mxu0 %v106
    %130 = vmatprep.subr.mxu0 0.0
    %131 = vmatpush1.msra.mxu0 %v107
    %132 = vmatprep.subr.mxu0 0.0
    %133 = vmatpush1.msra.mxu0 %v108
    %134 = vmatprep.subr.mxu0 0.0
    %135 = vmatpush1.msra.mxu0 %v109
    %136 = vmatprep.subr.mxu0 0.0
    %137 = vmatpush1.msra.mxu0 %v110
    %138 = vmatprep.subr.mxu0 0.0
    %139 = vmatpush1.msra.mxu0 %v111
    %140 = vmatprep.subr.mxu0 0.0
    %141 = vmatpush1.msra.mxu0 %v112
    %142 = vmatprep.subr.mxu0 0.0
    %143 = vmatpush1.msra.mxu0 %v113
    %144 = vmatprep.subr.mxu0 0.0
    %145 = vmatpush1.msra.mxu0 %v114
    %146 = vmatprep.subr.mxu0 0.0
    %147 = vmatpush1.msra.mxu0 %v115
    %148 = vmatprep.subr.mxu0 0.0
    %149 = vmatpush1.msra.mxu0 0.0
    %150 = vmatprep.subr.mxu0 0.0
    %151 = vmatpush1.msra.mxu0 0.0
    %152 = vmatprep.subr.mxu0 0.0
    %153 = vmatpush1.msra.mxu0 0.0
    %154 = vmatprep.subr.mxu0 0.0
    %155 = vmatpush1.msra.mxu0 0.0
    %156 = vmatprep.subr.mxu0 0.0
    %157 = vmatpush1.msra.mxu0 0.0
    %158 = vmatprep.subr.mxu0 0.0
    %159 = vmatpush1.msra.mxu0 0.0
    %160 = vmatprep.subr.mxu0 0.0
    %161 = vmatpush1.msra.mxu0 0.0
    %162 = vmatprep.subr.mxu0 0.0
    %163 = vmatpush1.msra.mxu0 0.0
    %164 = vmatprep.subr.mxu0 0.0
    %165 = vmatpush1.msra.mxu0 0.0
    %166 = vmatprep.subr.mxu0 0.0
    %167 = vmatpush1.msra.mxu0 0.0
    %168 = vmatprep.subr.mxu0 0.0
    %169 = vmatpush1.msra.mxu0 0.0
    %170 = vmatprep.subr.mxu0 0.0
    %171 = vmatpush1.msra.mxu0 0.0
    %172 = vmatprep.subr.mxu0 0.0
    %173 = vmatpush1.msra.mxu0 0.0
    %174 = vmatprep.subr.mxu0 0.0
    %175 = vmatpush1.msra.mxu0 0.0
    %176 = vmatprep.subr.mxu0 0.0
    %177 = vmatpush1.msra.mxu0 0.0
    %178 = vmatprep.subr.mxu0 0.0
    %179 = vmatpush1.msra.mxu0 0.0
    %180 = vmatprep.subr.mxu0 0.0
    %181 = vmatpush1.msra.mxu0 0.0
    %182 = vmatprep.subr.mxu0 0.0
    %183 = vmatpush1.msra.mxu0 0.0
    %184 = vmatprep.subr.mxu0 0.0
    %185 = vmatpush1.msra.mxu0 0.0
    %186 = vmatprep.subr.mxu0 0.0
    %187 = vmatpush1.msra.mxu0 0.0
    %188 = vmatprep.mubr.f32.mxu0 0.0
    %189 = vmatmul.mubr.f32.gmra.mrb[0].mxu0 %v122
    %v190 = vpop.f32.mrb[0].mxu0
    %v191 = vadd.f32 %v119, %v190
    %v192 = vpop.f32.mrb[0].mxu0
    %193 = vdwg.mxu0
    %v194 = vmax.f32 %v191, 0.0
    %v195 = vld [vmem:[%s3] sm:$0xff]
    %v196 = vld [vmem:[%s3 + $0x8] sm:$0xff]
    %v197 = vld [vmem:[%s3 + $0x10] sm:$0xff]
    %v198 = vld [vmem:[%s3 + $0x18] sm:$0xff]
    %v199 = vld [vmem:[%s3 + $0x20] sm:$0xff]
    %v200 = vld [vmem:[%s3 + $0x28] sm:$0xff]
    %v201 = vld [vmem:[%s3 + $0x30] sm:$0xff]
    %v202 = vld [vmem:[%s3 + $0x38] sm:$0xff]
    %v203 = vld [vmem:[%s3 + $0x40] sm:$0xff]
    %v204 = vld [vmem:[%s3 + $0x48] sm:$0xff]
    %v205 = vld [vmem:[%s3 + $0x50] sm:$0xff]
    %v206 = vld [vmem:[%s3 + $0x58] sm:$0xff]
    %v207 = vlaneseq
    %v208 = vshrl.u32 %v207, 7
    %v209 = vsub.s32 2, %v208
    %v210 = vrot.slane %v21, %v209
    %v212 = vsel %vm120, %v194, 0
    %214 = vmatprep.subr.mxu0 0.0
    %215 = vmatpush1.msra.mxu0 %v195
    %216 = vmatprep.subr.mxu0 0.0
    %217 = vmatpush1.msra.mxu0 %v196
    %218 = vmatprep.subr.mxu0 0.0
    %219 = vmatpush1.msra.mxu0 %v197
    %220 = vmatprep.subr.mxu0 0.0
    %221 = vmatpush1.msra.mxu0 %v198
    %222 = vmatprep.subr.mxu0 0.0
    %223 = vmatpush1.msra.mxu0 %v199
    %224 = vmatprep.subr.mxu0 0.0
    %225 = vmatpush1.msra.mxu0 %v200
    %226 = vmatprep.subr.mxu0 0.0
    %227 = vmatpush1.msra.mxu0 %v201
    %228 = vmatprep.subr.mxu0 0.0
    %229 = vmatpush1.msra.mxu0 %v202
    %230 = vmatprep.subr.mxu0 0.0
    %231 = vmatpush1.msra.mxu0 %v203
    %232 = vmatprep.subr.mxu0 0.0
    %233 = vmatpush1.msra.mxu0 %v204
    %234 = vmatprep.subr.mxu0 0.0
    %235 = vmatpush1.msra.mxu0 %v205
    %236 = vmatprep.subr.mxu0 0.0
    %237 = vmatpush1.msra.mxu0 %v206
    %238 = vmatprep.subr.mxu0 0.0
    %239 = vmatpush1.msra.mxu0 0.0
    %240 = vmatprep.subr.mxu0 0.0
    %241 = vmatpush1.msra.mxu0 0.0
    %242 = vmatprep.subr.mxu0 0.0
    %243 = vmatpush1.msra.mxu0 0.0
    %244 = vmatprep.subr.mxu0 0.0
    %245 = vmatpush1.msra.mxu0 0.0
    %246 = vmatprep.subr.mxu0 0.0
    %247 = vmatpush1.msra.mxu0 0.0
    %248 = vmatprep.subr.mxu0 0.0
    %249 = vmatpush1.msra.mxu0 0.0
    %250 = vmatprep.subr.mxu0 0.0
    %251 = vmatpush1.msra.mxu0 0.0
    %252 = vmatprep.subr.mxu0 0.0
    %253 = vmatpush1.msra.mxu0 0.0
    %254 = vmatprep.subr.mxu0 0.0
    %255 = vmatpush1.msra.mxu0 0.0
    %256 = vmatprep.subr.mxu0 0.0
    %257 = vmatpush1.msra.mxu0 0.0
    %258 = vmatprep.subr.mxu0 0.0
    %259 = vmatpush1.msra.mxu0 0.0
    %260 = vmatprep.subr.mxu0 0.0
    %261 = vmatpush1.msra.mxu0 0.0
    %262 = vmatprep.subr.mxu0 0.0
    %263 = vmatpush1.msra.mxu0 0.0
    %264 = vmatprep.subr.mxu0 0.0
    %265 = vmatpush1.msra.mxu0 0.0
    %266 = vmatprep.subr.mxu0 0.0
    %267 = vmatpush1.msra.mxu0 0.0
    %268 = vmatprep.subr.mxu0 0.0
    %269 = vmatpush1.msra.mxu0 0.0
    %270 = vmatprep.subr.mxu0 0.0
    %271 = vmatpush1.msra.mxu0 0.0
    %272 = vmatprep.subr.mxu0 0.0
    %273 = vmatpush1.msra.mxu0 0.0
    %274 = vmatprep.subr.mxu0 0.0
    %275 = vmatpush1.msra.mxu0 0.0
    %276 = vmatprep.subr.mxu0 0.0
    %277 = vmatpush1.msra.mxu0 0.0
    %278 = vmatprep.mubr.f32.mxu0 0.0
    %279 = vmatmul.mubr.f32.gmra.mrb[0].mxu0 %v212
    %v280 = vpop.f32.mrb[0].mxu0
    %v281 = vadd.f32 %v210, %v280
    %v282 = vpop.f32.mrb[0].mxu0
    %283 = vdwg.mxu0
    %vm284 = vcmask 195584
    %285 = vst.msk [vmem:[#allocation2] sm:$0xff] %vm284, %v281
    // Predicated region
    $region22: #{tpu_custom_call.1} parent=1 // pred_check
      _
    $region23: #{tpu_custom_call.1} parent=1 // pred_check_branch
      %287 = sbr.rel (0) target = $region25
    $region24: #{tpu_custom_call.1} parent=1 // pred_region
      %s289 = ssub.s32 128, 128
      %290 = vsyncadd [#allocation3], %s289
      %s292 = sshll.u32 [#allocation2], 4
      %s293 = int_to_ptr.vmem [resolvable:$true] %s292
      %295 = dma.vmem_to_hbm [thread:$0]  %s293, 128, %s5, [#allocation3]
    $region25: #{tpu_custom_call.1} parent=1 // pred_fallthru
      _
    // Predicated region
    $region26: #{tpu_custom_call.1} parent=1 // pred_check
      _
    $region27: #{tpu_custom_call.1} parent=1 // pred_check_branch
      %297 = sbr.rel (0) target = $region29
    $region28: #{tpu_custom_call.1} parent=1 // pred_region
      %298 = dma.done [#allocation3], 128
    $region29: #{tpu_custom_call.1} parent=1 // pred_fallthru
      _
    %299 = vsyncpa [#allocation3], 1

</llo_original>
